<compile_context>
chip_gen: v7x
topology: tpu7x:2x2x1
jax: 0.10.0
libtpu: 0.0.40
codegen_flags: <defaults>
</compile_context>

<pallas_src>
import math

import jax
import jax.numpy as jnp
from jax import lax
from jax.experimental import pallas as pl
from jax.experimental.pallas import tpu as pltpu

# ---- model hyper-parameters (small, TPU-tiling friendly) ----
B = 2                      # batch
S = 8                      # sequence length
H = 128                    # hidden size
NUM_HEADS = 4
HEAD_DIM = H // NUM_HEADS  # 32
HALF = HEAD_DIM // 2       # 16
INTERMEDIATE = 256         # MLP intermediate size
EPS = 1e-6                 # RMSNorm eps (LLaMA default)
ROPE_THETA = 10000.0       # rope_theta (LLaMA default)
BS = B * S                 # 16 rows fed to every matmul
SCALE = 1.0 / math.sqrt(HEAD_DIM)
NEG = -1e30                # finite "minus infinity" for the additive mask

# packed f32 constant layout (rows of a (50, H) array)
_BIAS_R = 0                # rows  0:16, cols 0:NUM_HEADS*BS  -> additive attention bias
_COS_R = 16                # rows 16:32                        -> RoPE cos, batch/head tiled
_SIN_R = 32                # rows 32:48                        -> RoPE sin
_LN1_R = 48                # row  48                           -> input_layernorm weight
_LN2_R = 49                # row  49                           -> post_attention_layernorm weight
_CONST_ROWS = 50

# packed bf16 weight slab column layout (all blocks have H rows)
_QKVR_C0, _QKVR_C1 = 0, 5 * H                          # q | k | v | rot(q) | rot(k)
_WO_C0, _WO_C1 = 5 * H, 6 * H                          # o_proj
_WGU_C0, _WGU_C1 = 6 * H, 6 * H + 2 * INTERMEDIATE     # gate | up


def _rms_norm(x, w):
    # LlamaRMSNorm: x * rsqrt(mean(x^2) + eps) * weight   (kept in f32)
    var = jnp.mean(x * x, axis=-1, keepdims=True)
    return (x * lax.rsqrt(var + EPS)) * w


def llama_layer_kernel(x_ref, c_ref, hm_ref, w1_ref, wd_ref, o_ref):
    x = x_ref[...]                                        # (BS, H) f32
    cos = c_ref[_COS_R:_COS_R + BS, :]                    # (BS, H) f32
    sin = c_ref[_SIN_R:_SIN_R + BS, :]
    ln1 = c_ref[_LN1_R:_LN1_R + 1, :]                     # (1, H)
    ln2 = c_ref[_LN2_R:_LN2_R + 1, :]
    bias = c_ref[_BIAS_R:_BIAS_R + BS, 0:NUM_HEADS * BS]  # (BS, NH*BS) additive mask
    headmask = hm_ref[...]                                # (NH*BS, H) bf16 0/1

    # ---------------- self attention ----------------
    xn = _rms_norm(x, ln1).astype(jnp.bfloat16)           # input_layernorm

    # One fused matmul: [q | k | v | q@rot | k@rot]  -> (BS, 5H) f32 accum
    qkvr = jnp.dot(xn, w1_ref[:, _QKVR_C0:_QKVR_C1],
                   preferred_element_type=jnp.float32)

    # Full-width RoPE (rotate_half folded into weight columns); fold attn scale into q.
    q = (qkvr[:, 0:H] * cos + qkvr[:, 3 * H:4 * H] * sin) * SCALE
    k = qkvr[:, H:2 * H] * cos + qkvr[:, 4 * H:5 * H] * sin
    v = qkvr[:, 2 * H:3 * H]

    q_bf = q.astype(jnp.bfloat16)
    k_bf = k.astype(jnp.bfloat16)
    v_bf = v.astype(jnp.bfloat16)

    # Head-block-diagonal K / V: row r encodes (head = r // BS, key = r % BS);
    # column c belongs to head c // HEAD_DIM; headmask zeroes all cross-head terms.
    k_blk = jnp.concatenate([k_bf] * NUM_HEADS, axis=0) * headmask   # (NH*BS, H)
    v_blk = jnp.concatenate([v_bf] * NUM_HEADS, axis=0) * headmask   # (NH*BS, H)

    # All-head scores in ONE full-depth (K=128) matmul:
    #   scores[i, h*BS + j] = q_h[i] . k_h[j]
    scores = lax.dot_general(q_bf, k_blk, (((1,), (1,)), ((), ())),
                             preferred_element_type=jnp.float32)      # (BS, NH*BS)
    scores = scores + bias                          # causal + per-batch block mask

    # Single row-max stabilization is safe: every 16-col head segment keeps its
    # diagonal entry, so the row max is finite and no segment fully underflows
    # at realistic score magnitudes.
    p = jnp.exp(scores - jnp.max(scores, axis=-1, keepdims=True))
    p_bf = p.astype(jnp.bfloat16)

    # P·V (head-block-diagonal) and the per-head softmax denominators broadcast to
    # that head's output columns (headmask doubles as the segment-sum matrix).
    out_un = jnp.dot(p_bf, v_blk, preferred_element_type=jnp.float32)    # (BS, H)
    denom = jnp.dot(p_bf, headmask, preferred_element_type=jnp.float32)  # (BS, H)
    out_all = out_un * pl.reciprocal(denom, approx=True)

    # Single o_proj matmul over all heads (columns already in [head, dim] order).
    attn = jnp.dot(out_all.astype(jnp.bfloat16), w1_ref[:, _WO_C0:_WO_C1],
                   preferred_element_type=jnp.float32)                   # (BS, H)

    h1 = x + attn                                   # first residual (f32)

    # ---------------- MLP ----------------
    h1n = _rms_norm(h1, ln2).astype(jnp.bfloat16)   # post_attention_layernorm
    gu = jnp.dot(h1n, w1_ref[:, _WGU_C0:_WGU_C1],
                 preferred_element_type=jnp.float32)                     # (BS, 2I)
    gate = gu[:, :INTERMEDIATE]
    up = gu[:, INTERMEDIATE:]
    act = (gate * jax.nn.sigmoid(gate) * up).astype(jnp.bfloat16)        # SiLU(g)*u
    down = jnp.dot(act, wd_ref[...], preferred_element_type=jnp.float32)

    o_ref[...] = h1 + down                          # second residual


# ---------------- host-side (one-time) preparation ----------------

def make_rope_tables():
    """HF LlamaRotaryEmbedding cos/sin, tiled per head and per batch -> (B*S, H)."""
    inv_freq = 1.0 / (ROPE_THETA ** (
        jnp.arange(0, HEAD_DIM, 2, dtype=jnp.float32) / HEAD_DIM))
    pos = jnp.arange(S, dtype=jnp.float32)
    freqs = pos[:, None] * inv_freq[None, :]             # (S, HEAD_DIM//2)
    emb = jnp.concatenate([freqs, freqs], axis=-1)       # (S, HEAD_DIM)
    cos = jnp.tile(jnp.cos(emb), (1, NUM_HEADS))         # (S, H), per-head replicated
    sin = jnp.tile(jnp.sin(emb), (1, NUM_HEADS))
    return jnp.tile(cos, (B, 1)), jnp.tile(sin, (B, 1))  # (B*S, H)


def _rotate_half_cols(w):
    """Column-wise rotate_half per head so that x @ rot(W) == rotate_half(x @ W).

    Assumes contiguous [head, head_dim] column ordering in wq/wk (torch default)."""
    w3 = w.reshape(H, NUM_HEADS, HEAD_DIM)
    wr = jnp.concatenate([-w3[:, :, HALF:], w3[:, :, :HALF]], axis=-1)
    return wr.reshape(H, H)


def make_attention_bias():
    """Additive (BS, NUM_HEADS*BS) bias: 0 where attended, -1e30 where masked."""
    r = jnp.arange(BS)[:, None]
    c = jnp.arange(BS)[None, :]
    keep = (r // S == c // S) & (c <= r)                       # per-batch causal
    bias16 = jnp.where(keep, 0.0, NEG).astype(jnp.float32)     # (BS, BS)
    return jnp.tile(bias16, (1, NUM_HEADS))                    # same mask per head block


def make_head_mask():
    """(NUM_HEADS*BS, H) bf16 0/1: row h*BS+j keeps only columns of head h."""
    r = jnp.arange(NUM_HEADS * BS)[:, None] // BS
    c = jnp.arange(H)[None, :] // HEAD_DIM
    return (r == c).astype(jnp.bfloat16)


def prepare_inputs(params):
    """Pack constants / fuse weights / cast to bf16 (done once, host-side)."""
    cos, sin = make_rope_tables()
    consts = jnp.zeros((_CONST_ROWS, H), jnp.float32)
    consts = consts.at[_BIAS_R:_BIAS_R + BS, 0:NUM_HEADS * BS].set(make_attention_bias())
    consts = consts.at[_COS_R:_COS_R + BS, :].set(cos)
    consts = consts.at[_SIN_R:_SIN_R + BS, :].set(sin)
    consts = consts.at[_LN1_R, :].set(params["ln1"].reshape(H))
    consts = consts.at[_LN2_R, :].set(params["ln2"].reshape(H))

    wq, wk, wv = params["wq"], params["wk"], params["wv"]
    w_qkvr = jnp.concatenate(
        [wq, wk, wv, _rotate_half_cols(wq), _rotate_half_cols(wk)], axis=1)   # (H, 5H)
    w_gu = jnp.concatenate([params["wg"], params["wu"]], axis=1)              # (H, 2I)
    w_pack = jnp.concatenate([w_qkvr, params["wo"], w_gu],
                             axis=1).astype(jnp.bfloat16)                     # (H, 1280)
    return {
        "consts": consts,                       # (50, H)  f32
        "headmask": make_head_mask(),           # (64, H)  bf16
        "w_pack": w_pack,                       # (H, 1280) bf16
        "wd": params["wd"].astype(jnp.bfloat16),  # (I, H)   bf16
    }


_VMEM_SPEC = pl.BlockSpec(memory_space=pltpu.MemorySpace.VMEM)


@jax.jit
def llama_layer_forward(hidden_states, prepped):
    """Equivalent of LLamaLayerWrapper.forward(hidden_states)."""
    x2 = hidden_states.reshape(BS, H)    # fold batch into the matmul M dimension
    out = pl.pallas_call(
        llama_layer_kernel,
        out_shape=jax.ShapeDtypeStruct((BS, H), jnp.float32),
        in_specs=[_VMEM_SPEC] * 5,
        out_specs=_VMEM_SPEC,
    )(x2, prepped["consts"], prepped["headmask"], prepped["w_pack"], prepped["wd"])
    return out.reshape(B, S, H)


def init_params(key):
    ks = jax.random.split(key, 7)
    scale = 0.02
    return {
        "ln1": jnp.ones((1, H), jnp.float32),
        "ln2": jnp.ones((1, H), jnp.float32),
        "wq": scale * jax.random.normal(ks[0], (H, H), jnp.float32),
        "wk": scale * jax.random.normal(ks[1], (H, H), jnp.float32),
        "wv": scale * jax.random.normal(ks[2], (H, H), jnp.float32),
        "wo": scale * jax.random.normal(ks[3], (H, H), jnp.float32),
        "wg": scale * jax.random.normal(ks[4], (H, INTERMEDIATE), jnp.float32),
        "wu": scale * jax.random.normal(ks[5], (H, INTERMEDIATE), jnp.float32),
        "wd": scale * jax.random.normal(ks[6], (INTERMEDIATE, H), jnp.float32),
    }


if __name__ == "__main__":
    key = jax.random.PRNGKey(0)
    k_x, k_p = jax.random.split(key)
    hidden_states = jax.random.normal(k_x, (B, S, H), jnp.float32)
    params = init_params(k_p)

    prepped = prepare_inputs(params)     # one-time packing / weight fusion / bf16 cast

    out = llama_layer_forward(hidden_states, prepped)
    jax.block_until_ready(out)
    assert out.shape == (B, S, H)
    assert bool(jnp.all(jnp.isfinite(out)))
    print("KERNEL_OK")
</pallas_src>

<mosaic_0001>
module attributes {stable_mosaic.version = 11 : i64} {
  func.func @llama_layer_kernel(%arg0: memref<16x128xf32, #tpu.memory_space<vmem>>, %arg1: memref<50x128xf32, #tpu.memory_space<vmem>>, %arg2: memref<64x128xbf16, #tpu.memory_space<vmem>>, %arg3: memref<128x1280xbf16, #tpu.memory_space<vmem>>, %arg4: memref<256x128xbf16, #tpu.memory_space<vmem>>, %arg5: memref<16x128xf32, #tpu.memory_space<vmem>>) attributes {dimension_semantics = [], scalar_prefetch = 0 : i64, scratch_operands = 0 : i64, tpu.core_type = #tpu.core_type<tc>} {
    %c0 = arith.constant 0 : index
    %c0_0 = arith.constant 0 : index
    %0 = vector.load %arg0[%c0, %c0_0] : memref<16x128xf32, #tpu.memory_space<vmem>>, vector<16x128xf32>
    %c16 = arith.constant 16 : index
    %c0_1 = arith.constant 0 : index
    %1 = vector.load %arg1[%c16, %c0_1] : memref<50x128xf32, #tpu.memory_space<vmem>>, vector<16x128xf32>
    %c32 = arith.constant 32 : index
    %c0_2 = arith.constant 0 : index
    %2 = vector.load %arg1[%c32, %c0_2] : memref<50x128xf32, #tpu.memory_space<vmem>>, vector<16x128xf32>
    %c48 = arith.constant 48 : index
    %c0_3 = arith.constant 0 : index
    %3 = vector.load %arg1[%c48, %c0_3] : memref<50x128xf32, #tpu.memory_space<vmem>>, vector<1x128xf32>
    %c49 = arith.constant 49 : index
    %c0_4 = arith.constant 0 : index
    %4 = vector.load %arg1[%c49, %c0_4] : memref<50x128xf32, #tpu.memory_space<vmem>>, vector<1x128xf32>
    %c0_5 = arith.constant 0 : index
    %c0_6 = arith.constant 0 : index
    %5 = vector.load %arg1[%c0_5, %c0_6] : memref<50x128xf32, #tpu.memory_space<vmem>>, vector<16x64xf32>
    %c0_7 = arith.constant 0 : index
    %c0_8 = arith.constant 0 : index
    %6 = vector.load %arg2[%c0_7, %c0_8] : memref<64x128xbf16, #tpu.memory_space<vmem>>, vector<64x128xbf16>
    %7 = arith.mulf %0, %0 : vector<16x128xf32>
    %cst = arith.constant dense<0.000000e+00> : vector<16xf32>
    %8 = vector.multi_reduction <add>, %7, %cst [1] : vector<16x128xf32> to vector<16xf32>
    %9 = vector.shape_cast %8 : vector<16xf32> to vector<16x1xf32>
    %cst_9 = arith.constant 1.280000e+02 : f32
    %10 = vector.broadcast %cst_9 : f32 to vector<16x1xf32>
    %11 = arith.divf %9, %10 : vector<16x1xf32>
    %cst_10 = arith.constant 9.99999997E-7 : f32
    %12 = vector.broadcast %cst_10 : f32 to vector<16x1xf32>
    %13 = arith.addf %11, %12 : vector<16x1xf32>
    %14 = math.rsqrt %13 : vector<16x1xf32>
    %15 = vector.broadcast %14 : vector<16x1xf32> to vector<16x128xf32>
    %16 = arith.mulf %0, %15 : vector<16x128xf32>
    %17 = vector.broadcast %3 : vector<1x128xf32> to vector<16x128xf32>
    %18 = arith.mulf %16, %17 : vector<16x128xf32>
    %19 = arith.truncf %18 : vector<16x128xf32> to vector<16x128xbf16>
    %c0_11 = arith.constant 0 : index
    %c0_12 = arith.constant 0 : index
    %20 = vector.load %arg3[%c0_11, %c0_12] : memref<128x1280xbf16, #tpu.memory_space<vmem>>, vector<128x640xbf16>
    %cst_13 = arith.constant dense<0.000000e+00> : vector<16x640xf32>
    %21 = tpu.matmul %19, %20, %cst_13 {dimension_numbers = #tpu.dot_dimension_numbers<[1], [0], [0], [1], [0, 0, 1, 1], [], []>} : vector<16x128xbf16>, vector<128x640xbf16>, vector<16x640xf32> -> vector<16x640xf32>
    %22 = vector.extract_strided_slice %21 {offsets = [0, 0], sizes = [16, 128], strides = [1, 1]} : vector<16x640xf32> to vector<16x128xf32>
    %23 = arith.mulf %22, %1 : vector<16x128xf32>
    %24 = vector.extract_strided_slice %21 {offsets = [0, 384], sizes = [16, 128], strides = [1, 1]} : vector<16x640xf32> to vector<16x128xf32>
    %25 = arith.mulf %24, %2 : vector<16x128xf32>
    %26 = arith.addf %23, %25 : vector<16x128xf32>
    %cst_14 = arith.constant 0.176776692 : f32
    %27 = vector.broadcast %cst_14 : f32 to vector<16x128xf32>
    %28 = arith.mulf %26, %27 : vector<16x128xf32>
    %29 = vector.extract_strided_slice %21 {offsets = [0, 128], sizes = [16, 128], strides = [1, 1]} : vector<16x640xf32> to vector<16x128xf32>
    %30 = arith.mulf %29, %1 : vector<16x128xf32>
    %31 = vector.extract_strided_slice %21 {offsets = [0, 512], sizes = [16, 128], strides = [1, 1]} : vector<16x640xf32> to vector<16x128xf32>
    %32 = arith.mulf %31, %2 : vector<16x128xf32>
    %33 = arith.addf %30, %32 : vector<16x128xf32>
    %34 = vector.extract_strided_slice %21 {offsets = [0, 256], sizes = [16, 128], strides = [1, 1]} : vector<16x640xf32> to vector<16x128xf32>
    %35 = arith.truncf %28 : vector<16x128xf32> to vector<16x128xbf16>
    %36 = arith.truncf %33 : vector<16x128xf32> to vector<16x128xbf16>
    %37 = arith.truncf %34 : vector<16x128xf32> to vector<16x128xbf16>
    %38 = tpu.concatenate %36, %36, %36, %36 in 0 : vector<16x128xbf16>, vector<16x128xbf16>, vector<16x128xbf16>, vector<16x128xbf16> -> vector<64x128xbf16>
    %39 = arith.mulf %38, %6 : vector<64x128xbf16>
    %40 = tpu.concatenate %37, %37, %37, %37 in 0 : vector<16x128xbf16>, vector<16x128xbf16>, vector<16x128xbf16>, vector<16x128xbf16> -> vector<64x128xbf16>
    %41 = arith.mulf %40, %6 : vector<64x128xbf16>
    %cst_15 = arith.constant dense<0.000000e+00> : vector<16x64xf32>
    %42 = tpu.matmul %35, %39, %cst_15 {dimension_numbers = #tpu.dot_dimension_numbers<[1], [1], [0], [0], [0, 0, 1, 0], [], []>} : vector<16x128xbf16>, vector<64x128xbf16>, vector<16x64xf32> -> vector<16x64xf32>
    %43 = arith.addf %42, %5 : vector<16x64xf32>
    %cst_16 = arith.constant dense<0xFF800000> : vector<16xf32>
    %44 = vector.multi_reduction <maximumf>, %43, %cst_16 [1] : vector<16x64xf32> to vector<16xf32>
    %45 = vector.shape_cast %44 : vector<16xf32> to vector<16x1xf32>
    %46 = vector.broadcast %45 : vector<16x1xf32> to vector<16x64xf32>
    %47 = arith.subf %43, %46 : vector<16x64xf32>
    %48 = math.exp %47 : vector<16x64xf32>
    %49 = arith.truncf %48 : vector<16x64xf32> to vector<16x64xbf16>
    %cst_17 = arith.constant dense<0.000000e+00> : vector<16x128xf32>
    %50 = tpu.matmul %49, %41, %cst_17 {dimension_numbers = #tpu.dot_dimension_numbers<[1], [0], [0], [1], [0, 0, 1, 1], [], []>} : vector<16x64xbf16>, vector<64x128xbf16>, vector<16x128xf32> -> vector<16x128xf32>
    %cst_18 = arith.constant dense<0.000000e+00> : vector<16x128xf32>
    %51 = tpu.matmul %49, %6, %cst_18 {dimension_numbers = #tpu.dot_dimension_numbers<[1], [0], [0], [1], [0, 0, 1, 1], [], []>} : vector<16x64xbf16>, vector<64x128xbf16>, vector<16x128xf32> -> vector<16x128xf32>
    %52 = tpu.reciprocal %51 {approx = true} : vector<16x128xf32> -> vector<16x128xf32>
    %53 = arith.mulf %50, %52 : vector<16x128xf32>
    %54 = arith.truncf %53 : vector<16x128xf32> to vector<16x128xbf16>
    %c0_19 = arith.constant 0 : index
    %c640 = arith.constant 640 : index
    %55 = vector.load %arg3[%c0_19, %c640] : memref<128x1280xbf16, #tpu.memory_space<vmem>>, vector<128x128xbf16>
    %cst_20 = arith.constant dense<0.000000e+00> : vector<16x128xf32>
    %56 = tpu.matmul %54, %55, %cst_20 {dimension_numbers = #tpu.dot_dimension_numbers<[1], [0], [0], [1], [0, 0, 1, 1], [], []>} : vector<16x128xbf16>, vector<128x128xbf16>, vector<16x128xf32> -> vector<16x128xf32>
    %57 = arith.addf %0, %56 : vector<16x128xf32>
    %58 = arith.mulf %57, %57 : vector<16x128xf32>
    %cst_21 = arith.constant dense<0.000000e+00> : vector<16xf32>
    %59 = vector.multi_reduction <add>, %58, %cst_21 [1] : vector<16x128xf32> to vector<16xf32>
    %60 = vector.shape_cast %59 : vector<16xf32> to vector<16x1xf32>
    %cst_22 = arith.constant 1.280000e+02 : f32
    %61 = vector.broadcast %cst_22 : f32 to vector<16x1xf32>
    %62 = arith.divf %60, %61 : vector<16x1xf32>
    %cst_23 = arith.constant 9.99999997E-7 : f32
    %63 = vector.broadcast %cst_23 : f32 to vector<16x1xf32>
    %64 = arith.addf %62, %63 : vector<16x1xf32>
    %65 = math.rsqrt %64 : vector<16x1xf32>
    %66 = vector.broadcast %65 : vector<16x1xf32> to vector<16x128xf32>
    %67 = arith.mulf %57, %66 : vector<16x128xf32>
    %68 = vector.broadcast %4 : vector<1x128xf32> to vector<16x128xf32>
    %69 = arith.mulf %67, %68 : vector<16x128xf32>
    %70 = arith.truncf %69 : vector<16x128xf32> to vector<16x128xbf16>
    %c0_24 = arith.constant 0 : index
    %c768 = arith.constant 768 : index
    %71 = vector.load %arg3[%c0_24, %c768] : memref<128x1280xbf16, #tpu.memory_space<vmem>>, vector<128x512xbf16>
    %cst_25 = arith.constant dense<0.000000e+00> : vector<16x512xf32>
    %72 = tpu.matmul %70, %71, %cst_25 {dimension_numbers = #tpu.dot_dimension_numbers<[1], [0], [0], [1], [0, 0, 1, 1], [], []>} : vector<16x128xbf16>, vector<128x512xbf16>, vector<16x512xf32> -> vector<16x512xf32>
    %73 = vector.extract_strided_slice %72 {offsets = [0, 0], sizes = [16, 256], strides = [1, 1]} : vector<16x512xf32> to vector<16x256xf32>
    %74 = vector.extract_strided_slice %72 {offsets = [0, 256], sizes = [16, 256], strides = [1, 1]} : vector<16x512xf32> to vector<16x256xf32>
    %75 = arith.negf %73 : vector<16x256xf32>
    %76 = math.exp %75 : vector<16x256xf32>
    %cst_26 = arith.constant 1.000000e+00 : f32
    %77 = vector.broadcast %cst_26 : f32 to vector<16x256xf32>
    %78 = arith.addf %77, %76 : vector<16x256xf32>
    %79 = arith.divf %77, %78 : vector<16x256xf32>
    %80 = arith.mulf %73, %79 : vector<16x256xf32>
    %81 = arith.mulf %80, %74 : vector<16x256xf32>
    %82 = arith.truncf %81 : vector<16x256xf32> to vector<16x256xbf16>
    %c0_27 = arith.constant 0 : index
    %c0_28 = arith.constant 0 : index
    %83 = vector.load %arg4[%c0_27, %c0_28] : memref<256x128xbf16, #tpu.memory_space<vmem>>, vector<256x128xbf16>
    %cst_29 = arith.constant dense<0.000000e+00> : vector<16x128xf32>
    %84 = tpu.matmul %82, %83, %cst_29 {dimension_numbers = #tpu.dot_dimension_numbers<[1], [0], [0], [1], [0, 0, 1, 1], [], []>} : vector<16x256xbf16>, vector<256x128xbf16>, vector<16x128xf32> -> vector<16x128xf32>
    %85 = arith.addf %57, %84 : vector<16x128xf32>
    %c0_30 = arith.constant 0 : index
    %c0_31 = arith.constant 0 : index
    %86 = vector.load %arg5[%c0_30, %c0_31] : memref<16x128xf32, #tpu.memory_space<vmem>>, vector<16x128xf32>
    tpu.vector_store %arg5[%c0_30, %c0_31], %85 {strides = array<i32>} : memref<16x128xf32, #tpu.memory_space<vmem>>, vector<16x128xf32>,
    return
  }
}

</mosaic_0001>

<llo_original>
// kernel: llama_layer_forward.1
$region0: #{llama_layer_forward.1}
  #allocation0 [shape = 'u32[]', space=smem, size = 0x4, offset = 0x4, fixed_abs, tag = 'smem constant byte address 0x4 - core index']
  #allocation1 [shape = 'u32[144,128]{1,0:T(1,128)}', space=vmem, size = 0x12000, scoped, tag = 'internal scratch']
  %s0 = inlined_call_operand.hbm [shape: f32[16,128], index: 0, kind: input, shape index: {}]
  %s1 = inlined_call_operand.hbm [shape: f32[50,128], index: 1, kind: input, shape index: {}]
  %s2 = inlined_call_operand.hbm [shape: bf16[64,128], index: 2, kind: input, shape index: {}]
  %s3 = inlined_call_operand.hbm [shape: bf16[128,1280], index: 3, kind: input, shape index: {}]
  %s4 = inlined_call_operand.hbm [shape: bf16[256,128], index: 4, kind: input, shape index: {}]
  %s5 = inlined_call_operand.hbm [shape: f32[16,128], index: 5, kind: output, shape index: {}]
  %s6 = sld [smem:[#allocation0]]
  $region50: #{llama_layer_forward.1} parent=0
    _
  %s8 = ssub.s32 1, %s6
  %s9 = scalar_select 0, %s8, %s6
  $region1: #{llama_layer_forward.1} parent=0
    #allocation2 [shape = 'u8[8192]{0}', space=vmem, size = 0x2000, scoped, tag = 'input window, operand 0, single buffered']
    #allocation3 [shape = 's32[1]{0}', space=sflag, size = 0x4, scoped, tag = 'scoped memory for llama_layer_forward.1']
    #allocation4 [shape = 's32[1]{0}', space=sflag, size = 0x4, scoped, tag = 'scoped memory for llama_layer_forward.1']
    #allocation5 [shape = 'u8[28672]{0}', space=vmem, size = 0x7000, scoped, tag = 'input window, operand 1, single buffered']
    #allocation6 [shape = 's32[1]{0}', space=sflag, size = 0x4, scoped, tag = 'scoped memory for llama_layer_forward.1']
    #allocation7 [shape = 'u8[16384]{0}', space=vmem, size = 0x4000, scoped, tag = 'input window, operand 2, single buffered']
    #allocation8 [shape = 'u8[327680]{0}', space=vmem, size = 0x50000, scoped, tag = 'input window, operand 3, single buffered']
    #allocation9 [shape = 's32[1]{0}', space=sflag, size = 0x4, scoped, tag = 'scoped memory for llama_layer_forward.1']
    #allocation10 [shape = 'u8[65536]{0}', space=vmem, size = 0x10000, scoped, tag = 'input window, operand 4, single buffered']
    #allocation11 [shape = 'u8[8192]{0}', space=vmem, size = 0x2000, scoped, tag = 'output window, operand 0, single buffered']
    %10 = vsyncpa [#allocation3], 0
    %11 = vsyncpa [#allocation6], 0
    %12 = vsyncpa [#allocation9], 0
    %13 = vsyncpa [#allocation4], 0
    // Predicated region
    $region2: #{llama_layer_forward.1} parent=1 // pred_check
      _
    $region3: #{llama_layer_forward.1} parent=1 // pred_check_branch
      %15 = sbr.rel (0) target = $region5
    $region4: #{llama_layer_forward.1} parent=1 // pred_region
      %s17 = ssub.s32 256, 256
      %18 = vsyncadd [#allocation3], %s17
      %s19 = sshll.u32 [#allocation2], 4
      %s20 = int_to_ptr.vmem [resolvable:$true] %s19
      %25 = dma.hbm_to_vmem [thread:$0]  %s0, 256, %s20, [#allocation3], 128, 128, 8
    $region5: #{llama_layer_forward.1} parent=1 // pred_fallthru
      _
    // Predicated region
    $region6: #{llama_layer_forward.1} parent=1 // pred_check
      _
    $region7: #{llama_layer_forward.1} parent=1 // pred_check_branch
      %27 = sbr.rel (0) target = $region9
    $region8: #{llama_layer_forward.1} parent=1 // pred_region
      %s29 = ssub.s32 896, 896
      %30 = vsyncadd [#allocation6], %s29
      %s31 = sshll.u32 [#allocation5], 4
      %s32 = int_to_ptr.vmem [resolvable:$true] %s31
      %37 = dma.hbm_to_vmem [thread:$0]  %s1, 896, %s32, [#allocation6], 128, 128, 8
    $region9: #{llama_layer_forward.1} parent=1 // pred_fallthru
      _
    // Predicated region
    $region10: #{llama_layer_forward.1} parent=1 // pred_check
      _
    $region11: #{llama_layer_forward.1} parent=1 // pred_check_branch
      %39 = sbr.rel (0) target = $region13
    $region12: #{llama_layer_forward.1} parent=1 // pred_region
      %s41 = ssub.s32 512, 512
      %42 = vsyncadd [#allocation6], %s41
      %s43 = sshll.u32 [#allocation7], 4
      %s44 = int_to_ptr.vmem [resolvable:$true] %s43
      %49 = dma.hbm_to_vmem [thread:$0]  %s2, 512, %s44, [#allocation6], 64, 64, 4
    $region13: #{llama_layer_forward.1} parent=1 // pred_fallthru
      _
    // Predicated region
    $region14: #{llama_layer_forward.1} parent=1 // pred_check
      _
    $region15: #{llama_layer_forward.1} parent=1 // pred_check_branch
      %51 = sbr.rel (0) target = $region17
    $region16: #{llama_layer_forward.1} parent=1 // pred_region
      %s53 = ssub.s32 10240, 10240
      %54 = vsyncadd [#allocation9], %s53
      %s55 = sshll.u32 [#allocation8], 4
      %s56 = int_to_ptr.vmem [resolvable:$true] %s55
      %61 = dma.hbm_to_vmem [thread:$0]  %s3, 10240, %s56, [#allocation9], 640, 640, 40
    $region17: #{llama_layer_forward.1} parent=1 // pred_fallthru
      _
    // Predicated region
    $region18: #{llama_layer_forward.1} parent=1 // pred_check
      _
    $region19: #{llama_layer_forward.1} parent=1 // pred_check_branch
      %63 = sbr.rel (0) target = $region21
    $region20: #{llama_layer_forward.1} parent=1 // pred_region
      %s65 = ssub.s32 2048, 2048
      %66 = vsyncadd [#allocation9], %s65
      %s67 = sshll.u32 [#allocation10], 4
      %s68 = int_to_ptr.vmem [resolvable:$true] %s67
      %73 = dma.hbm_to_vmem [thread:$0]  %s4, 2048, %s68, [#allocation9], 64, 64, 4
    $region21: #{llama_layer_forward.1} parent=1 // pred_fallthru
      _
    // Predicated region
    $region22: #{llama_layer_forward.1} parent=1 // pred_check
      _
    $region23: #{llama_layer_forward.1} parent=1 // pred_check_branch
      %75 = sbr.rel (0) target = $region25
    $region24: #{llama_layer_forward.1} parent=1 // pred_region
      %76 = dma.done [#allocation3], 256
    $region25: #{llama_layer_forward.1} parent=1 // pred_fallthru
      _
    // Predicated region
    $region26: #{llama_layer_forward.1} parent=1 // pred_check
      _
    $region27: #{llama_layer_forward.1} parent=1 // pred_check_branch
      %78 = sbr.rel (0) target = $region29
    $region28: #{llama_layer_forward.1} parent=1 // pred_region
      %79 = dma.done [#allocation6], 896
    $region29: #{llama_layer_forward.1} parent=1 // pred_fallthru
      _
    // Predicated region
    $region30: #{llama_layer_forward.1} parent=1 // pred_check
      _
    $region31: #{llama_layer_forward.1} parent=1 // pred_check_branch
      %81 = sbr.rel (0) target = $region33
    $region32: #{llama_layer_forward.1} parent=1 // pred_region
      %82 = dma.done [#allocation6], 512
    $region33: #{llama_layer_forward.1} parent=1 // pred_fallthru
      _
    // Predicated region
    $region34: #{llama_layer_forward.1} parent=1 // pred_check
      _
    $region35: #{llama_layer_forward.1} parent=1 // pred_check_branch
      %84 = sbr.rel (0) target = $region37
    $region36: #{llama_layer_forward.1} parent=1 // pred_region
      %85 = dma.done [#allocation9], 10240
    $region37: #{llama_layer_forward.1} parent=1 // pred_fallthru
      _
    // Predicated region
    $region38: #{llama_layer_forward.1} parent=1 // pred_check
      _
    $region39: #{llama_layer_forward.1} parent=1 // pred_check_branch
      %87 = sbr.rel (0) target = $region41
    $region40: #{llama_layer_forward.1} parent=1 // pred_region
      %88 = dma.done [#allocation9], 2048
    $region41: #{llama_layer_forward.1} parent=1 // pred_fallthru
      _
    %v90 = vld [vmem:[#allocation2] sm:$0xff]
    %v91 = vld [vmem:[#allocation2 + $0x8] sm:$0xff]
    %v92 = vld [vmem:[#allocation5 + $0x10] sm:$0xff]
    %v93 = vld [vmem:[#allocation5 + $0x18] sm:$0xff]
    %v94 = vld [vmem:[#allocation5 + $0x20] sm:$0xff]
    %v95 = vld [vmem:[#allocation5 + $0x28] sm:$0xff]
    %v96 = vld [vmem:[#allocation5 + $0x30] sm:$0x1]
    %v97 = vld [vmem:[#allocation5 + $0x31] sm:$0x1]
    %v98 = vld [vmem:[#allocation5] sm:$0xff]
    %v99 = vld [vmem:[#allocation5 + $0x8] sm:$0xff]
    %v100 = vld [vmem:[#allocation7] sm:$0xf]
    %v101 = vld [vmem:[#allocation7 + $0x4] sm:$0xf]
    %v102 = vld [vmem:[#allocation7 + $0x8] sm:$0xf]
    %v103 = vld [vmem:[#allocation7 + $0xc] sm:$0xf]
    %v104 = vld [vmem:[#allocation7 + $0x10] sm:$0xf]
    %v105 = vld [vmem:[#allocation7 + $0x14] sm:$0xf]
    %v106 = vld [vmem:[#allocation7 + $0x18] sm:$0xf]
    %v107 = vld [vmem:[#allocation7 + $0x1c] sm:$0xf]
    %v108 = vmul.f32 %v90, %v90
    %v109 = vmul.f32 %v91, %v91
    %110 = vadd.xlane.f32.xlu0 %v108
    %v111 = vpop.xlane.xlu0 %110
    %112 = vadd.xlane.f32.xlu0 %v109
    %v113 = vpop.xlane.xlu0 %112
    %v114 = vrcp.pop 128.0
    %v115 = vmul.f32 %v111, %v114
    %v116 = vmul.f32 %v113, %v114
    %v117 = vadd.f32 %v115, 1e-06
    %v118 = vadd.f32 %v116, 1e-06
    %v119 = vrsqrt.pop %v117
    %v120 = vrsqrt.pop %v118
    %v121 = vmul.f32 %v90, %v119
    %v122 = vmul.f32 %v91, %v120
    %v123 = vlaneseq
    %v124 = vshrl.u32 %v123, 7
    %v125 = vsub.s32 0, %v124
    %v126 = vrot.slane %v96, %v125
    %v127 = vmul.f32 %v121, %v126
    %v128 = vmul.f32 %v122, %v126
    %v129 = vpack.c.bf16 %v128, %v127
    %v130 = vld [vmem:[#allocation8] sm:$0xff]
    %v131 = vld [vmem:[#allocation8 + $0x8] sm:$0xff]
    %v132 = vld [vmem:[#allocation8 + $0x10] sm:$0xf]
    %v133 = vld [vmem:[#allocation8 + $0x28] sm:$0xff]
    %v134 = vld [vmem:[#allocation8 + $0x30] sm:$0xff]
    %v135 = vld [vmem:[#allocation8 + $0x38] sm:$0xf]
    %v136 = vld [vmem:[#allocation8 + $0x50] sm:$0xff]
    %v137 = vld [vmem:[#allocation8 + $0x58] sm:$0xff]
    %v138 = vld [vmem:[#allocation8 + $0x60] sm:$0xf]
    %v139 = vld [vmem:[#allocation8 + $0x78] sm:$0xff]
    %v140 = vld [vmem:[#allocation8 + $0x80] sm:$0xff]
    %v141 = vld [vmem:[#allocation8 + $0x88] sm:$0xf]
    %v142 = vld [vmem:[#allocation8 + $0xa0] sm:$0xff]
    %v143 = vld [vmem:[#allocation8 + $0xa8] sm:$0xff]
    %v144 = vld [vmem:[#allocation8 + $0xb0] sm:$0xf]
    %v145 = vld [vmem:[#allocation8 + $0xc8] sm:$0xff]
    %v146 = vld [vmem:[#allocation8 + $0xd0] sm:$0xff]
    %v147 = vld [vmem:[#allocation8 + $0xd8] sm:$0xf]
    %v148 = vld [vmem:[#allocation8 + $0xf0] sm:$0xff]
    %v149 = vld [vmem:[#allocation8 + $0xf8] sm:$0xff]
    %v150 = vld [vmem:[#allocation8 + $0x100] sm:$0xf]
    %v151 = vld [vmem:[#allocation8 + $0x118] sm:$0xff]
    %v152 = vld [vmem:[#allocation8 + $0x120] sm:$0xff]
    %v153 = vld [vmem:[#allocation8 + $0x128] sm:$0xf]
    %v154 = vld [vmem:[#allocation8 + $0x140] sm:$0xff]
    %v155 = vld [vmem:[#allocation8 + $0x148] sm:$0xff]
    %v156 = vld [vmem:[#allocation8 + $0x150] sm:$0xf]
    %v157 = vld [vmem:[#allocation8 + $0x168] sm:$0xff]
    %v158 = vld [vmem:[#allocation8 + $0x170] sm:$0xff]
    %v159 = vld [vmem:[#allocation8 + $0x178] sm:$0xf]
    %v160 = vld [vmem:[#allocation8 + $0x190] sm:$0xff]
    %v161 = vld [vmem:[#allocation8 + $0x198] sm:$0xff]
    %v162 = vld [vmem:[#allocation8 + $0x1a0] sm:$0xf]
    %v163 = vld [vmem:[#allocation8 + $0x1b8] sm:$0xff]
    %v164 = vld [vmem:[#allocation8 + $0x1c0] sm:$0xff]
    %v165 = vld [vmem:[#allocation8 + $0x1c8] sm:$0xf]
    %v166 = vld [vmem:[#allocation8 + $0x1e0] sm:$0xff]
    %v167 = vld [vmem:[#allocation8 + $0x1e8] sm:$0xff]
    %v168 = vld [vmem:[#allocation8 + $0x1f0] sm:$0xf]
    %v169 = vld [vmem:[#allocation8 + $0x208] sm:$0xff]
    %v170 = vld [vmem:[#allocation8 + $0x210] sm:$0xff]
    %v171 = vld [vmem:[#allocation8 + $0x218] sm:$0xf]
    %v172 = vld [vmem:[#allocation8 + $0x230] sm:$0xff]
    %v173 = vld [vmem:[#allocation8 + $0x238] sm:$0xff]
    %v174 = vld [vmem:[#allocation8 + $0x240] sm:$0xf]
    %v175 = vld [vmem:[#allocation8 + $0x258] sm:$0xff]
    %v176 = vld [vmem:[#allocation8 + $0x260] sm:$0xff]
    %v177 = vld [vmem:[#allocation8 + $0x268] sm:$0xf]
    %v226 = vunpack.c.l.b16 %v130
    %v227 = vunpack.c.h.b16 %v130
    %v228 = vunpack.c.l.b16 %v131
    %v229 = vunpack.c.h.b16 %v131
    %v230 = vunpack.c.l.b16 %v132
    %v231 = vunpack.c.l.b16 %v133
    %v232 = vunpack.c.h.b16 %v133
    %v233 = vunpack.c.l.b16 %v134
    %v234 = vunpack.c.h.b16 %v134
    %v235 = vunpack.c.l.b16 %v135
    %v236 = vunpack.c.l.b16 %v136
    %v237 = vunpack.c.h.b16 %v136
    %v238 = vunpack.c.l.b16 %v137
    %v239 = vunpack.c.h.b16 %v137
    %v240 = vunpack.c.l.b16 %v138
    %v241 = vunpack.c.l.b16 %v139
    %v242 = vunpack.c.h.b16 %v139
    %v243 = vunpack.c.l.b16 %v140
    %v244 = vunpack.c.h.b16 %v140
    %v245 = vunpack.c.l.b16 %v141
    %v246 = vunpack.c.l.b16 %v142
    %v247 = vunpack.c.h.b16 %v142
    %v248 = vunpack.c.l.b16 %v143
    %v249 = vunpack.c.h.b16 %v143
    %v250 = vunpack.c.l.b16 %v144
    %v251 = vunpack.c.l.b16 %v145
    %v252 = vunpack.c.h.b16 %v145
    %v253 = vunpack.c.l.b16 %v146
    %v254 = vunpack.c.h.b16 %v146
    %v255 = vunpack.c.l.b16 %v147
    %v256 = vunpack.c.l.b16 %v148
    %v257 = vunpack.c.h.b16 %v148
    %v258 = vunpack.c.l.b16 %v149
    %v259 = vunpack.c.h.b16 %v149
    %v260 = vunpack.c.l.b16 %v150
    %v261 = vunpack.c.l.b16 %v151
    %v262 = vunpack.c.h.b16 %v151
    %v263 = vunpack.c.l.b16 %v152
    %v264 = vunpack.c.h.b16 %v152
    %v265 = vunpack.c.l.b16 %v153
    %v266 = vunpack.c.l.b16 %v154
    %v267 = vunpack.c.h.b16 %v154
    %v268 = vunpack.c.l.b16 %v155
    %v269 = vunpack.c.h.b16 %v155
    %v270 = vunpack.c.l.b16 %v156
    %v271 = vunpack.c.l.b16 %v157
    %v272 = vunpack.c.h.b16 %v157
    %v273 = vunpack.c.l.b16 %v158
    %v274 = vunpack.c.h.b16 %v158
    %v275 = vunpack.c.l.b16 %v159
    %v276 = vunpack.c.l.b16 %v160
    %v277 = vunpack.c.h.b16 %v160
    %v278 = vunpack.c.l.b16 %v161
    %v279 = vunpack.c.h.b16 %v161
    %v280 = vunpack.c.l.b16 %v162
    %v281 = vunpack.c.l.b16 %v163
    %v282 = vunpack.c.h.b16 %v163
    %v283 = vunpack.c.l.b16 %v164
    %v284 = vunpack.c.h.b16 %v164
    %v285 = vunpack.c.l.b16 %v165
    %v286 = vunpack.c.l.b16 %v166
    %v287 = vunpack.c.h.b16 %v166
    %v288 = vunpack.c.l.b16 %v167
    %v289 = vunpack.c.h.b16 %v167
    %v290 = vunpack.c.l.b16 %v168
    %v291 = vunpack.c.l.b16 %v169
    %v292 = vunpack.c.h.b16 %v169
    %v293 = vunpack.c.l.b16 %v170
    %v294 = vunpack.c.h.b16 %v170
    %v295 = vunpack.c.l.b16 %v171
    %v296 = vunpack.c.l.b16 %v172
    %v297 = vunpack.c.h.b16 %v172
    %v298 = vunpack.c.l.b16 %v173
    %v299 = vunpack.c.h.b16 %v173
    %v300 = vunpack.c.l.b16 %v174
    %v301 = vunpack.c.l.b16 %v175
    %v302 = vunpack.c.h.b16 %v175
    %v303 = vunpack.c.l.b16 %v176
    %v304 = vunpack.c.h.b16 %v176
    %v305 = vunpack.c.l.b16 %v177
    %v306 = vpack.c.b16 %v231, %v226
    %v307 = vpack.c.b16 %v232, %v227
    %v308 = vpack.c.b16 %v233, %v228
    %v309 = vpack.c.b16 %v234, %v229
    %v310 = vpack.c.b16 %v235, %v230
    %v311 = vpack.c.b16 %v241, %v236
    %v312 = vpack.c.b16 %v242, %v237
    %v313 = vpack.c.b16 %v243, %v238
    %v314 = vpack.c.b16 %v244, %v239
    %v315 = vpack.c.b16 %v245, %v240
    %v316 = vpack.c.b16 %v251, %v246
    %v317 = vpack.c.b16 %v252, %v247
    %v318 = vpack.c.b16 %v253, %v248
    %v319 = vpack.c.b16 %v254, %v249
    %v320 = vpack.c.b16 %v255, %v250
    %v321 = vpack.c.b16 %v261, %v256
    %v322 = vpack.c.b16 %v262, %v257
    %v323 = vpack.c.b16 %v263, %v258
    %v324 = vpack.c.b16 %v264, %v259
    %v325 = vpack.c.b16 %v265, %v260
    %v326 = vpack.c.b16 %v271, %v266
    %v327 = vpack.c.b16 %v272, %v267
    %v328 = vpack.c.b16 %v273, %v268
    %v329 = vpack.c.b16 %v274, %v269
    %v330 = vpack.c.b16 %v275, %v270
    %v331 = vpack.c.b16 %v281, %v276
    %v332 = vpack.c.b16 %v282, %v277
    %v333 = vpack.c.b16 %v283, %v278
    %v334 = vpack.c.b16 %v284, %v279
    %v335 = vpack.c.b16 %v285, %v280
    %v336 = vpack.c.b16 %v291, %v286
    %v337 = vpack.c.b16 %v292, %v287
    %v338 = vpack.c.b16 %v293, %v288
    %v339 = vpack.c.b16 %v294, %v289
    %v340 = vpack.c.b16 %v295, %v290
    %v341 = vpack.c.b16 %v301, %v296
    %v342 = vpack.c.b16 %v302, %v297
    %v343 = vpack.c.b16 %v303, %v298
    %v344 = vpack.c.b16 %v304, %v299
    %v345 = vpack.c.b16 %v305, %v300
    %386 = vmatprep.subr.bf16.mxu0 %v307
    %387 = vmatpush1.bf16.msra.mxu0 %v306
    %388 = vmatprep.subr.bf16.mxu0 %v312
    %389 = vmatpush1.bf16.msra.mxu0 %v311
    %390 = vmatprep.subr.bf16.mxu0 %v317
    %391 = vmatpush1.bf16.msra.mxu0 %v316
    %392 = vmatprep.subr.bf16.mxu0 %v322
    %393 = vmatpush1.bf16.msra.mxu0 %v321
    %394 = vmatprep.subr.bf16.mxu0 %v327
    %395 = vmatpush1.bf16.msra.mxu0 %v326
    %396 = vmatprep.subr.bf16.mxu0 %v332
    %397 = vmatpush1.bf16.msra.mxu0 %v331
    %398 = vmatprep.subr.bf16.mxu0 %v337
    %399 = vmatpush1.bf16.msra.mxu0 %v336
    %400 = vmatprep.subr.bf16.mxu0 %v342
    %401 = vmatpush1.bf16.msra.mxu0 %v341
    %402 = vmatprep.subr.bf16.mxu0 0
    %403 = vmatpush1.bf16.msra.mxu0 0
    %404 = vmatprep.subr.bf16.mxu0 0
    %405 = vmatpush1.bf16.msra.mxu0 0
    %406 = vmatprep.subr.bf16.mxu0 0
    %407 = vmatpush1.bf16.msra.mxu0 0
    %408 = vmatprep.subr.bf16.mxu0 0
    %409 = vmatpush1.bf16.msra.mxu0 0
    %410 = vmatprep.subr.bf16.mxu0 0
    %411 = vmatpush1.bf16.msra.mxu0 0
    %412 = vmatprep.subr.bf16.mxu0 0
    %413 = vmatpush1.bf16.msra.mxu0 0
    %414 = vmatprep.subr.bf16.mxu0 0
    %415 = vmatpush1.bf16.msra.mxu0 0
    %416 = vmatprep.subr.bf16.mxu0 0
    %417 = vmatpush1.bf16.msra.mxu0 0
    %418 = vmatprep.mubr.bf16.mxu0 0
    %419 = vmatmul.mubr.bf16.gmra.mrb[0].mxu0 %v129
    %v420 = vpop.f32.mrb[0].mxu0
    %v421 = vadd.f32 0.0, %v420
    %v422 = vpop.f32.mrb[0].mxu0
    %v423 = vadd.f32 0.0, %v422
    %v424 = vpop.f32.mrb[0].mxu0
    %v425 = vadd.f32 0.0, %v424
    %v426 = vpop.f32.mrb[0].mxu0
    %v427 = vadd.f32 0.0, %v426
    %428 = vdwg.mxu0
    %429 = vmatprep.subr.bf16.mxu0 %v309
    %430 = vmatpush1.bf16.msra.mxu0 %v308
    %431 = vmatprep.subr.bf16.mxu0 %v314
    %432 = vmatpush1.bf16.msra.mxu0 %v313
    %433 = vmatprep.subr.bf16.mxu0 %v319
    %434 = vmatpush1.bf16.msra.mxu0 %v318
    %435 = vmatprep.subr.bf16.mxu0 %v324
    %436 = vmatpush1.bf16.msra.mxu0 %v323
    %437 = vmatprep.subr.bf16.mxu0 %v329
    %438 = vmatpush1.bf16.msra.mxu0 %v328
    %439 = vmatprep.subr.bf16.mxu0 %v334
    %440 = vmatpush1.bf16.msra.mxu0 %v333
    %441 = vmatprep.subr.bf16.mxu0 %v339
    %442 = vmatpush1.bf16.msra.mxu0 %v338
    %443 = vmatprep.subr.bf16.mxu0 %v344
    %444 = vmatpush1.bf16.msra.mxu0 %v343
    %445 = vmatprep.subr.bf16.mxu0 0
    %446 = vmatpush1.bf16.msra.mxu0 0
    %447 = vmatprep.subr.bf16.mxu0 0
    %448 = vmatpush1.bf16.msra.mxu0 0
    %449 = vmatprep.subr.bf16.mxu0 0
    %450 = vmatpush1.bf16.msra.mxu0 0
    %451 = vmatprep.subr.bf16.mxu0 0
    %452 = vmatpush1.bf16.msra.mxu0 0
    %453 = vmatprep.subr.bf16.mxu0 0
    %454 = vmatpush1.bf16.msra.mxu0 0
    %455 = vmatprep.subr.bf16.mxu0 0
    %456 = vmatpush1.bf16.msra.mxu0 0
    %457 = vmatprep.subr.bf16.mxu0 0
    %458 = vmatpush1.bf16.msra.mxu0 0
    %459 = vmatprep.subr.bf16.mxu0 0
    %460 = vmatpush1.bf16.msra.mxu0 0
    %461 = vmatprep.mubr.bf16.mxu0 0
    %462 = vmatmul.mubr.bf16.gmra.mrb[0].mxu0 %v129
    %v463 = vpop.f32.mrb[0].mxu0
    %v464 = vadd.f32 0.0, %v463
    %v465 = vpop.f32.mrb[0].mxu0
    %v466 = vadd.f32 0.0, %v465
    %v467 = vpop.f32.mrb[0].mxu0
    %v468 = vadd.f32 0.0, %v467
    %v469 = vpop.f32.mrb[0].mxu0
    %v470 = vadd.f32 0.0, %v469
    %471 = vdwg.mxu0
    %472 = vmatprep.subr.bf16.mxu0 0
    %473 = vmatpush1.bf16.msra.mxu0 %v310
    %474 = vmatprep.subr.bf16.mxu0 0
    %475 = vmatpush1.bf16.msra.mxu0 %v315
    %476 = vmatprep.subr.bf16.mxu0 0
    %477 = vmatpush1.bf16.msra.mxu0 %v320
    %478 = vmatprep.subr.bf16.mxu0 0
    %479 = vmatpush1.bf16.msra.mxu0 %v325
    %480 = vmatprep.subr.bf16.mxu0 0
    %481 = vmatpush1.bf16.msra.mxu0 %v330
    %482 = vmatprep.subr.bf16.mxu0 0
    %483 = vmatpush1.bf16.msra.mxu0 %v335
    %484 = vmatprep.subr.bf16.mxu0 0
    %485 = vmatpush1.bf16.msra.mxu0 %v340
    %486 = vmatprep.subr.bf16.mxu0 0
    %487 = vmatpush1.bf16.msra.mxu0 %v345
    %488 = vmatprep.subr.bf16.mxu0 0
    %489 = vmatpush1.bf16.msra.mxu0 0
    %490 = vmatprep.subr.bf16.mxu0 0
    %491 = vmatpush1.bf16.msra.mxu0 0
    %492 = vmatprep.subr.bf16.mxu0 0
    %493 = vmatpush1.bf16.msra.mxu0 0
    %494 = vmatprep.subr.bf16.mxu0 0
    %495 = vmatpush1.bf16.msra.mxu0 0
    %496 = vmatprep.subr.bf16.mxu0 0
    %497 = vmatpush1.bf16.msra.mxu0 0
    %498 = vmatprep.subr.bf16.mxu0 0
    %499 = vmatpush1.bf16.msra.mxu0 0
    %500 = vmatprep.subr.bf16.mxu0 0
    %501 = vmatpush1.bf16.msra.mxu0 0
    %502 = vmatprep.subr.bf16.mxu0 0
    %503 = vmatpush1.bf16.msra.mxu0 0
    %504 = vmatprep.mubr.bf16.mxu0 0
    %505 = vmatmul.mubr.bf16.gmra.mrb[0].mxu0 %v129
    %v506 = vpop.f32.mrb[0].mxu0
    %v507 = vadd.f32 0.0, %v506
    %v508 = vpop.f32.mrb[0].mxu0
    %v509 = vpop.f32.mrb[0].mxu0
    %v510 = vadd.f32 0.0, %v509
    %v511 = vpop.f32.mrb[0].mxu0
    %512 = vdwg.mxu0
    %v513 = vmul.f32 %v421, %v92
    %v514 = vmul.f32 %v425, %v93
    %v515 = vmul.f32 %v466, %v94
    %v516 = vmul.f32 %v470, %v95
    %v517 = vadd.f32 %v513, %v515
    %v518 = vadd.f32 %v514, %v516
    %v519 = vmul.f32 %v517, 0.17677669
    %v520 = vmul.f32 %v518, 0.17677669
    %v521 = vmul.f32 %v423, %v92
    %v522 = vmul.f32 %v427, %v93
    %v523 = vmul.f32 %v507, %v94
    %v524 = vmul.f32 %v510, %v95
    %v525 = vadd.f32 %v521, %v523
    %v526 = vadd.f32 %v522, %v524
    %v527 = vpack.c.bf16 %v520, %v519
    %v528 = vpack.c.bf16 %v526, %v525
    %v529 = vpack.c.bf16 %v468, %v464
    %v538 = vunpack.c.l.b16 %v100
    %v539 = vunpack.c.l.b16 %v101
    %v540 = vunpack.c.l.b16 %v102
    %v541 = vunpack.c.l.b16 %v103
    %v542 = vunpack.c.l.b16 %v104
    %v543 = vunpack.c.l.b16 %v105
    %v544 = vunpack.c.l.b16 %v106
    %v545 = vunpack.c.l.b16 %v107
    %v546 = vpack.c.b16 %v539, %v538
    %v547 = vpack.c.b16 %v541, %v540
    %v548 = vpack.c.b16 %v543, %v542
    %v549 = vpack.c.b16 %v545, %v544
    %v554 = vmul.bf16 %v528, %v546
    %v555 = vmul.bf16 %v528, %v547
    %v556 = vmul.bf16 %v528, %v548
    %v557 = vmul.bf16 %v528, %v549
    %v558 = vmul.bf16 %v529, %v546
    %v559 = vmul.bf16 %v529, %v547
    %v560 = vmul.bf16 %v529, %v548
    %v561 = vmul.bf16 %v529, %v549
    %562 = vmatprep.subr.bf16.mxu0 0
    %563 = vmatpush1.bf16.xpose.msra.mxu0 %v554
    %564 = vmatprep.subr.bf16.mxu0 0
    %565 = vmatpush1.bf16.xpose.msra.mxu0 %v555
    %566 = vmatprep.subr.bf16.mxu0 0
    %567 = vmatpush1.bf16.xpose.msra.mxu0 %v556
    %568 = vmatprep.subr.bf16.mxu0 0
    %569 = vmatpush1.bf16.xpose.msra.mxu0 %v557
    %570 = vmatprep.subr.bf16.mxu0 0
    %571 = vmatpush1.bf16.xpose.msra.mxu0 0
    %572 = vmatprep.subr.bf16.mxu0 0
    %573 = vmatpush1.bf16.xpose.msra.mxu0 0
    %574 = vmatprep.subr.bf16.mxu0 0
    %575 = vmatpush1.bf16.xpose.msra.mxu0 0
    %576 = vmatprep.subr.bf16.mxu0 0
    %577 = vmatpush1.bf16.xpose.msra.mxu0 0
    %578 = vmatprep.subr.bf16.mxu0 0
    %579 = vmatpush1.bf16.xpose.msra.mxu0 0
    %580 = vmatprep.subr.bf16.mxu0 0
    %581 = vmatpush1.bf16.xpose.msra.mxu0 0
    %582 = vmatprep.subr.bf16.mxu0 0
    %583 = vmatpush1.bf16.xpose.msra.mxu0 0
    %584 = vmatprep.subr.bf16.mxu0 0
    %585 = vmatpush1.bf16.xpose.msra.mxu0 0
    %586 = vmatprep.subr.bf16.mxu0 0
    %587 = vmatpush1.bf16.xpose.msra.mxu0 0
    %588 = vmatprep.subr.bf16.mxu0 0
    %589 = vmatpush1.bf16.xpose.msra.mxu0 0
    %590 = vmatprep.subr.bf16.mxu0 0
    %591 = vmatpush1.bf16.xpose.msra.mxu0 0
    %592 = vmatprep.subr.bf16.mxu0 0
    %593 = vmatpush1.bf16.xpose.msra.mxu0 0
    %594 = vmatprep.mubr.bf16.mxu0 0
    %595 = vmatmul.mubr.bf16.gmra.mrb[0].mxu0 %v527
    %v596 = vpop.f32.mrb[0].mxu0
    %v597 = vadd.f32 %v98, %v596
    %v598 = vpop.f32.mrb[0].mxu0
    %v599 = vpop.f32.mrb[0].mxu0
    %v600 = vadd.f32 %v99, %v599
    %v601 = vpop.f32.mrb[0].mxu0
    %602 = vdwg.mxu0
    %vm603 = vcmask 523264
    %v604 = vsel %vm603, %v597, -inf
    %605 = vmax.xlane.f32.xlu0 %v604
    %v606 = vpop.xlane.xlu0 %605
    %v607 = vsel %vm603, %v600, -inf
    %608 = vmax.xlane.f32.xlu0 %v607
    %v609 = vpop.xlane.xlu0 %608
    %v610 = vsub.f32 %v597, %v606
    %v611 = vsub.f32 %v600, %v609
    %v612 = vmul.f32 %v610, 1.442695
    %v613 = vpow.pop %v612
    %v614 = vmul.f32 %v611, 1.442695
    %v615 = vpow.pop %v614
    %v616 = vpack.c.bf16 %v615, %v613
    %v618 = vsel %vm603, %v616, 0
    %620 = vmatprep.subr.bf16.mxu0 0
    %621 = vmatpush1.bf16.msra.mxu0 %v558
    %622 = vmatprep.subr.bf16.mxu0 0
    %623 = vmatpush1.bf16.msra.mxu0 %v559
    %624 = vmatprep.subr.bf16.mxu0 0
    %625 = vmatpush1.bf16.msra.mxu0 %v560
    %626 = vmatprep.subr.bf16.mxu0 0
    %627 = vmatpush1.bf16.msra.mxu0 %v561
    %628 = vmatprep.subr.bf16.mxu0 0
    %629 = vmatpush1.bf16.msra.mxu0 0
    %630 = vmatprep.subr.bf16.mxu0 0
    %631 = vmatpush1.bf16.msra.mxu0 0
    %632 = vmatprep.subr.bf16.mxu0 0
    %633 = vmatpush1.bf16.msra.mxu0 0
    %634 = vmatprep.subr.bf16.mxu0 0
    %635 = vmatpush1.bf16.msra.mxu0 0
    %636 = vmatprep.subr.bf16.mxu0 0
    %637 = vmatpush1.bf16.msra.mxu0 0
    %638 = vmatprep.subr.bf16.mxu0 0
    %639 = vmatpush1.bf16.msra.mxu0 0
    %640 = vmatprep.subr.bf16.mxu0 0
    %641 = vmatpush1.bf16.msra.mxu0 0
    %642 = vmatprep.subr.bf16.mxu0 0
    %643 = vmatpush1.bf16.msra.mxu0 0
    %644 = vmatprep.subr.bf16.mxu0 0
    %645 = vmatpush1.bf16.msra.mxu0 0
    %646 = vmatprep.subr.bf16.mxu0 0
    %647 = vmatpush1.bf16.msra.mxu0 0
    %648 = vmatprep.subr.bf16.mxu0 0
    %649 = vmatpush1.bf16.msra.mxu0 0
    %650 = vmatprep.subr.bf16.mxu0 0
    %651 = vmatpush1.bf16.msra.mxu0 0
    %652 = vmatprep.mubr.bf16.mxu0 0
    %653 = vmatmul.mubr.bf16.gmra.mrb[0].mxu0 %v618
    %v654 = vpop.f32.mrb[0].mxu0
    %v655 = vadd.f32 0.0, %v654
    %v656 = vpop.f32.mrb[0].mxu0
    %v657 = vpop.f32.mrb[0].mxu0
    %v658 = vadd.f32 0.0, %v657
    %v659 = vpop.f32.mrb[0].mxu0
    %660 = vdwg.mxu0
    %661 = vmatprep.subr.bf16.mxu0 0
    %662 = vmatpush1.bf16.msra.mxu0 %v546
    %663 = vmatprep.subr.bf16.mxu0 0
    %664 = vmatpush1.bf16.msra.mxu0 %v547
    %665 = vmatprep.subr.bf16.mxu0 0
    %666 = vmatpush1.bf16.msra.mxu0 %v548
    %667 = vmatprep.subr.bf16.mxu0 0
    %668 = vmatpush1.bf16.msra.mxu0 %v549
    %669 = vmatprep.subr.bf16.mxu0 0
    %670 = vmatpush1.bf16.msra.mxu0 0
    %671 = vmatprep.subr.bf16.mxu0 0
    %672 = vmatpush1.bf16.msra.mxu0 0
    %673 = vmatprep.subr.bf16.mxu0 0
    %674 = vmatpush1.bf16.msra.mxu0 0
    %675 = vmatprep.subr.bf16.mxu0 0
    %676 = vmatpush1.bf16.msra.mxu0 0
    %677 = vmatprep.subr.bf16.mxu0 0
    %678 = vmatpush1.bf16.msra.mxu0 0
    %679 = vmatprep.subr.bf16.mxu0 0
    %680 = vmatpush1.bf16.msra.mxu0 0
    %681 = vmatprep.subr.bf16.mxu0 0
    %682 = vmatpush1.bf16.msra.mxu0 0
    %683 = vmatprep.subr.bf16.mxu0 0
    %684 = vmatpush1.bf16.msra.mxu0 0
    %685 = vmatprep.subr.bf16.mxu0 0
    %686 = vmatpush1.bf16.msra.mxu0 0
    %687 = vmatprep.subr.bf16.mxu0 0
    %688 = vmatpush1.bf16.msra.mxu0 0
    %689 = vmatprep.subr.bf16.mxu0 0
    %690 = vmatpush1.bf16.msra.mxu0 0
    %691 = vmatprep.subr.bf16.mxu0 0
    %692 = vmatpush1.bf16.msra.mxu0 0
    %693 = vmatprep.mubr.bf16.mxu0 0
    %694 = vmatmul.mubr.bf16.gmra.mrb[0].mxu0 %v618
    %v695 = vpop.f32.mrb[0].mxu0
    %v696 = vadd.f32 0.0, %v695
    %v697 = vpop.f32.mrb[0].mxu0
    %v698 = vpop.f32.mrb[0].mxu0
    %v699 = vadd.f32 0.0, %v698
    %v700 = vpop.f32.mrb[0].mxu0
    %701 = vdwg.mxu0
    %v702 = vrcp.pop %v696
    %v703 = vrcp.pop %v699
    %v704 = vmul.f32 %v655, %v702
    %v705 = vmul.f32 %v658, %v703
    %v706 = vpack.c.bf16 %v705, %v704
    %v707 = vld [vmem:[#allocation8 + $0x14] sm:$0xf]
    %v708 = vld [vmem:[#allocation8 + $0x3c] sm:$0xf]
    %v709 = vld [vmem:[#allocation8 + $0x64] sm:$0xf]
    %v710 = vld [vmem:[#allocation8 + $0x8c] sm:$0xf]
    %v711 = vld [vmem:[#allocation8 + $0xb4] sm:$0xf]
    %v712 = vld [vmem:[#allocation8 + $0xdc] sm:$0xf]
    %v713 = vld [vmem:[#allocation8 + $0x104] sm:$0xf]
    %v714 = vld [vmem:[#allocation8 + $0x12c] sm:$0xf]
    %v715 = vld [vmem:[#allocation8 + $0x154] sm:$0xf]
    %v716 = vld [vmem:[#allocation8 + $0x17c] sm:$0xf]
    %v717 = vld [vmem:[#allocation8 + $0x1a4] sm:$0xf]
    %v718 = vld [vmem:[#allocation8 + $0x1cc] sm:$0xf]
    %v719 = vld [vmem:[#allocation8 + $0x1f4] sm:$0xf]
    %v720 = vld [vmem:[#allocation8 + $0x21c] sm:$0xf]
    %v721 = vld [vmem:[#allocation8 + $0x244] sm:$0xf]
    %v722 = vld [vmem:[#allocation8 + $0x26c] sm:$0xf]
    %v739 = vunpack.c.l.b16 %v707
    %v740 = vunpack.c.l.b16 %v708
    %v741 = vunpack.c.l.b16 %v709
    %v742 = vunpack.c.l.b16 %v710
    %v743 = vunpack.c.l.b16 %v711
    %v744 = vunpack.c.l.b16 %v712
    %v745 = vunpack.c.l.b16 %v713
    %v746 = vunpack.c.l.b16 %v714
    %v747 = vunpack.c.l.b16 %v715
    %v748 = vunpack.c.l.b16 %v716
    %v749 = vunpack.c.l.b16 %v717
    %v750 = vunpack.c.l.b16 %v718
    %v751 = vunpack.c.l.b16 %v719
    %v752 = vunpack.c.l.b16 %v720
    %v753 = vunpack.c.l.b16 %v721
    %v754 = vunpack.c.l.b16 %v722
    %v755 = vpack.c.b16 %v740, %v739
    %v756 = vpack.c.b16 %v742, %v741
    %v757 = vpack.c.b16 %v744, %v743
    %v758 = vpack.c.b16 %v746, %v745
    %v759 = vpack.c.b16 %v748, %v747
    %v760 = vpack.c.b16 %v750, %v749
    %v761 = vpack.c.b16 %v752, %v751
    %v762 = vpack.c.b16 %v754, %v753
    %771 = vmatprep.subr.bf16.mxu0 0
    %772 = vmatpush1.bf16.msra.mxu0 %v755
    %773 = vmatprep.subr.bf16.mxu0 0
    %774 = vmatpush1.bf16.msra.mxu0 %v756
    %775 = vmatprep.subr.bf16.mxu0 0
    %776 = vmatpush1.bf16.msra.mxu0 %v757
    %777 = vmatprep.subr.bf16.mxu0 0
    %778 = vmatpush1.bf16.msra.mxu0 %v758
    %779 = vmatprep.subr.bf16.mxu0 0
    %780 = vmatpush1.bf16.msra.mxu0 %v759
    %781 = vmatprep.subr.bf16.mxu0 0
    %782 = vmatpush1.bf16.msra.mxu0 %v760
    %783 = vmatprep.subr.bf16.mxu0 0
    %784 = vmatpush1.bf16.msra.mxu0 %v761
    %785 = vmatprep.subr.bf16.mxu0 0
    %786 = vmatpush1.bf16.msra.mxu0 %v762
    %787 = vmatprep.subr.bf16.mxu0 0
    %788 = vmatpush1.bf16.msra.mxu0 0
    %789 = vmatprep.subr.bf16.mxu0 0
    %790 = vmatpush1.bf16.msra.mxu0 0
    %791 = vmatprep.subr.bf16.mxu0 0
    %792 = vmatpush1.bf16.msra.mxu0 0
    %793 = vmatprep.subr.bf16.mxu0 0
    %794 = vmatpush1.bf16.msra.mxu0 0
    %795 = vmatprep.subr.bf16.mxu0 0
    %796 = vmatpush1.bf16.msra.mxu0 0
    %797 = vmatprep.subr.bf16.mxu0 0
    %798 = vmatpush1.bf16.msra.mxu0 0
    %799 = vmatprep.subr.bf16.mxu0 0
    %800 = vmatpush1.bf16.msra.mxu0 0
    %801 = vmatprep.subr.bf16.mxu0 0
    %802 = vmatpush1.bf16.msra.mxu0 0
    %803 = vmatprep.mubr.bf16.mxu0 0
    %804 = vmatmul.mubr.bf16.gmra.mrb[0].mxu0 %v706
    %v805 = vpop.f32.mrb[0].mxu0
    %v806 = vadd.f32 0.0, %v805
    %v807 = vpop.f32.mrb[0].mxu0
    %v808 = vpop.f32.mrb[0].mxu0
    %v809 = vadd.f32 0.0, %v808
    %v810 = vpop.f32.mrb[0].mxu0
    %811 = vdwg.mxu0
    %v812 = vadd.f32 %v90, %v806
    %v813 = vadd.f32 %v91, %v809
    %v814 = vmul.f32 %v812, %v812
    %v815 = vmul.f32 %v813, %v813
    %816 = vadd.xlane.f32.xlu0 %v814
    %v817 = vpop.xlane.xlu0 %816
    %818 = vadd.xlane.f32.xlu0 %v815
    %v819 = vpop.xlane.xlu0 %818
    %v820 = vmul.f32 %v817, %v114
    %v821 = vmul.f32 %v819, %v114
    %v822 = vadd.f32 %v820, 1e-06
    %v823 = vadd.f32 %v821, 1e-06
    %v824 = vrsqrt.pop %v822
    %v825 = vrsqrt.pop %v823
    %v826 = vmul.f32 %v812, %v824
    %v827 = vmul.f32 %v813, %v825
    %v828 = vlaneseq
    %v829 = vshrl.u32 %v828, 7
    %v830 = vsub.s32 0, %v829
    %v831 = vrot.slane %v97, %v830
    %v832 = vmul.f32 %v826, %v831
    %v833 = vmul.f32 %v827, %v831
    %v834 = vpack.c.bf16 %v833, %v832
    %v835 = vld [vmem:[#allocation8 + $0x18] sm:$0xff]
    %v836 = vld [vmem:[#allocation8 + $0x20] sm:$0xff]
    %v837 = vld [vmem:[#allocation8 + $0x40] sm:$0xff]
    %v838 = vld [vmem:[#allocation8 + $0x48] sm:$0xff]
    %v839 = vld [vmem:[#allocation8 + $0x68] sm:$0xff]
    %v840 = vld [vmem:[#allocation8 + $0x70] sm:$0xff]
    %v841 = vld [vmem:[#allocation8 + $0x90] sm:$0xff]
    %v842 = vld [vmem:[#allocation8 + $0x98] sm:$0xff]
    %v843 = vld [vmem:[#allocation8 + $0xb8] sm:$0xff]
    %v844 = vld [vmem:[#allocation8 + $0xc0] sm:$0xff]
    %v845 = vld [vmem:[#allocation8 + $0xe0] sm:$0xff]
    %v846 = vld [vmem:[#allocation8 + $0xe8] sm:$0xff]
    %v847 = vld [vmem:[#allocation8 + $0x108] sm:$0xff]
    %v848 = vld [vmem:[#allocation8 + $0x110] sm:$0xff]
    %v849 = vld [vmem:[#allocation8 + $0x130] sm:$0xff]
    %v850 = vld [vmem:[#allocation8 + $0x138] sm:$0xff]
    %v851 = vld [vmem:[#allocation8 + $0x158] sm:$0xff]
    %v852 = vld [vmem:[#allocation8 + $0x160] sm:$0xff]
    %v853 = vld [vmem:[#allocation8 + $0x180] sm:$0xff]
    %v854 = vld [vmem:[#allocation8 + $0x188] sm:$0xff]
    %v855 = vld [vmem:[#allocation8 + $0x1a8] sm:$0xff]
    %v856 = vld [vmem:[#allocation8 + $0x1b0] sm:$0xff]
    %v857 = vld [vmem:[#allocation8 + $0x1d0] sm:$0xff]
    %v858 = vld [vmem:[#allocation8 + $0x1d8] sm:$0xff]
    %v859 = vld [vmem:[#allocation8 + $0x1f8] sm:$0xff]
    %v860 = vld [vmem:[#allocation8 + $0x200] sm:$0xff]
    %v861 = vld [vmem:[#allocation8 + $0x220] sm:$0xff]
    %v862 = vld [vmem:[#allocation8 + $0x228] sm:$0xff]
    %v863 = vld [vmem:[#allocation8 + $0x248] sm:$0xff]
    %v864 = vld [vmem:[#allocation8 + $0x250] sm:$0xff]
    %v865 = vld [vmem:[#allocation8 + $0x270] sm:$0xff]
    %v866 = vld [vmem:[#allocation8 + $0x278] sm:$0xff]
    %v899 = vunpack.c.l.b16 %v835
    %v900 = vunpack.c.h.b16 %v835
    %v901 = vunpack.c.l.b16 %v836
    %v902 = vunpack.c.h.b16 %v836
    %v903 = vunpack.c.l.b16 %v837
    %v904 = vunpack.c.h.b16 %v837
    %v905 = vunpack.c.l.b16 %v838
    %v906 = vunpack.c.h.b16 %v838
    %v907 = vunpack.c.l.b16 %v839
    %v908 = vunpack.c.h.b16 %v839
    %v909 = vunpack.c.l.b16 %v840
    %v910 = vunpack.c.h.b16 %v840
    %v911 = vunpack.c.l.b16 %v841
    %v912 = vunpack.c.h.b16 %v841
    %v913 = vunpack.c.l.b16 %v842
    %v914 = vunpack.c.h.b16 %v842
    %v915 = vunpack.c.l.b16 %v843
    %v916 = vunpack.c.h.b16 %v843
    %v917 = vunpack.c.l.b16 %v844
    %v918 = vunpack.c.h.b16 %v844
    %v919 = vunpack.c.l.b16 %v845
    %v920 = vunpack.c.h.b16 %v845
    %v921 = vunpack.c.l.b16 %v846
    %v922 = vunpack.c.h.b16 %v846
    %v923 = vunpack.c.l.b16 %v847
    %v924 = vunpack.c.h.b16 %v847
    %v925 = vunpack.c.l.b16 %v848
    %v926 = vunpack.c.h.b16 %v848
    %v927 = vunpack.c.l.b16 %v849
    %v928 = vunpack.c.h.b16 %v849
    %v929 = vunpack.c.l.b16 %v850
    %v930 = vunpack.c.h.b16 %v850
    %v931 = vunpack.c.l.b16 %v851
    %v932 = vunpack.c.h.b16 %v851
    %v933 = vunpack.c.l.b16 %v852
    %v934 = vunpack.c.h.b16 %v852
    %v935 = vunpack.c.l.b16 %v853
    %v936 = vunpack.c.h.b16 %v853
    %v937 = vunpack.c.l.b16 %v854
    %v938 = vunpack.c.h.b16 %v854
    %v939 = vunpack.c.l.b16 %v855
    %v940 = vunpack.c.h.b16 %v855
    %v941 = vunpack.c.l.b16 %v856
    %v942 = vunpack.c.h.b16 %v856
    %v943 = vunpack.c.l.b16 %v857
    %v944 = vunpack.c.h.b16 %v857
    %v945 = vunpack.c.l.b16 %v858
    %v946 = vunpack.c.h.b16 %v858
    %v947 = vunpack.c.l.b16 %v859
    %v948 = vunpack.c.h.b16 %v859
    %v949 = vunpack.c.l.b16 %v860
    %v950 = vunpack.c.h.b16 %v860
    %v951 = vunpack.c.l.b16 %v861
    %v952 = vunpack.c.h.b16 %v861
    %v953 = vunpack.c.l.b16 %v862
    %v954 = vunpack.c.h.b16 %v862
    %v955 = vunpack.c.l.b16 %v863
    %v956 = vunpack.c.h.b16 %v863
    %v957 = vunpack.c.l.b16 %v864
    %v958 = vunpack.c.h.b16 %v864
    %v959 = vunpack.c.l.b16 %v865
    %v960 = vunpack.c.h.b16 %v865
    %v961 = vunpack.c.l.b16 %v866
    %v962 = vunpack.c.h.b16 %v866
    %v963 = vpack.c.b16 %v903, %v899
    %v964 = vpack.c.b16 %v904, %v900
    %v965 = vpack.c.b16 %v905, %v901
    %v966 = vpack.c.b16 %v906, %v902
    %v967 = vpack.c.b16 %v911, %v907
    %v968 = vpack.c.b16 %v912, %v908
    %v969 = vpack.c.b16 %v913, %v909
    %v970 = vpack.c.b16 %v914, %v910
    %v971 = vpack.c.b16 %v919, %v915
    %v972 = vpack.c.b16 %v920, %v916
    %v973 = vpack.c.b16 %v921, %v917
    %v974 = vpack.c.b16 %v922, %v918
    %v975 = vpack.c.b16 %v927, %v923
    %v976 = vpack.c.b16 %v928, %v924
    %v977 = vpack.c.b16 %v929, %v925
    %v978 = vpack.c.b16 %v930, %v926
    %v979 = vpack.c.b16 %v935, %v931
    %v980 = vpack.c.b16 %v936, %v932
    %v981 = vpack.c.b16 %v937, %v933
    %v982 = vpack.c.b16 %v938, %v934
    %v983 = vpack.c.b16 %v943, %v939
    %v984 = vpack.c.b16 %v944, %v940
    %v985 = vpack.c.b16 %v945, %v941
    %v986 = vpack.c.b16 %v946, %v942
    %v987 = vpack.c.b16 %v951, %v947
    %v988 = vpack.c.b16 %v952, %v948
    %v989 = vpack.c.b16 %v953, %v949
    %v990 = vpack.c.b16 %v954, %v950
    %v991 = vpack.c.b16 %v959, %v955
    %v992 = vpack.c.b16 %v960, %v956
    %v993 = vpack.c.b16 %v961, %v957
    %v994 = vpack.c.b16 %v962, %v958
    %1027 = vmatprep.subr.bf16.mxu0 %v964
    %1028 = vmatpush1.bf16.msra.mxu0 %v963
    %1029 = vmatprep.subr.bf16.mxu0 %v968
    %1030 = vmatpush1.bf16.msra.mxu0 %v967
    %1031 = vmatprep.subr.bf16.mxu0 %v972
    %1032 = vmatpush1.bf16.msra.mxu0 %v971
    %1033 = vmatprep.subr.bf16.mxu0 %v976
    %1034 = vmatpush1.bf16.msra.mxu0 %v975
    %1035 = vmatprep.subr.bf16.mxu0 %v980
    %1036 = vmatpush1.bf16.msra.mxu0 %v979
    %1037 = vmatprep.subr.bf16.mxu0 %v984
    %1038 = vmatpush1.bf16.msra.mxu0 %v983
    %1039 = vmatprep.subr.bf16.mxu0 %v988
    %1040 = vmatpush1.bf16.msra.mxu0 %v987
    %1041 = vmatprep.subr.bf16.mxu0 %v992
    %1042 = vmatpush1.bf16.msra.mxu0 %v991
    %1043 = vmatprep.subr.bf16.mxu0 0
    %1044 = vmatpush1.bf16.msra.mxu0 0
    %1045 = vmatprep.subr.bf16.mxu0 0
    %1046 = vmatpush1.bf16.msra.mxu0 0
    %1047 = vmatprep.subr.bf16.mxu0 0
    %1048 = vmatpush1.bf16.msra.mxu0 0
    %1049 = vmatprep.subr.bf16.mxu0 0
    %1050 = vmatpush1.bf16.msra.mxu0 0
    %1051 = vmatprep.subr.bf16.mxu0 0
    %1052 = vmatpush1.bf16.msra.mxu0 0
    %1053 = vmatprep.subr.bf16.mxu0 0
    %1054 = vmatpush1.bf16.msra.mxu0 0
    %1055 = vmatprep.subr.bf16.mxu0 0
    %1056 = vmatpush1.bf16.msra.mxu0 0
    %1057 = vmatprep.subr.bf16.mxu0 0
    %1058 = vmatpush1.bf16.msra.mxu0 0
    %1059 = vmatprep.mubr.bf16.mxu0 0
    %1060 = vmatmul.mubr.bf16.gmra.mrb[0].mxu0 %v834
    %v1061 = vpop.f32.mrb[0].mxu0
    %v1062 = vadd.f32 0.0, %v1061
    %v1063 = vpop.f32.mrb[0].mxu0
    %v1064 = vadd.f32 0.0, %v1063
    %v1065 = vpop.f32.mrb[0].mxu0
    %v1066 = vadd.f32 0.0, %v1065
    %v1067 = vpop.f32.mrb[0].mxu0
    %v1068 = vadd.f32 0.0, %v1067
    %1069 = vdwg.mxu0
    %1070 = vmatprep.subr.bf16.mxu0 %v966
    %1071 = vmatpush1.bf16.msra.mxu0 %v965
    %1072 = vmatprep.subr.bf16.mxu0 %v970
    %1073 = vmatpush1.bf16.msra.mxu0 %v969
    %1074 = vmatprep.subr.bf16.mxu0 %v974
    %1075 = vmatpush1.bf16.msra.mxu0 %v973
    %1076 = vmatprep.subr.bf16.mxu0 %v978
    %1077 = vmatpush1.bf16.msra.mxu0 %v977
    %1078 = vmatprep.subr.bf16.mxu0 %v982
    %1079 = vmatpush1.bf16.msra.mxu0 %v981
    %1080 = vmatprep.subr.bf16.mxu0 %v986
    %1081 = vmatpush1.bf16.msra.mxu0 %v985
    %1082 = vmatprep.subr.bf16.mxu0 %v990
    %1083 = vmatpush1.bf16.msra.mxu0 %v989
    %1084 = vmatprep.subr.bf16.mxu0 %v994
    %1085 = vmatpush1.bf16.msra.mxu0 %v993
    %1086 = vmatprep.subr.bf16.mxu0 0
    %1087 = vmatpush1.bf16.msra.mxu0 0
    %1088 = vmatprep.subr.bf16.mxu0 0
    %1089 = vmatpush1.bf16.msra.mxu0 0
    %1090 = vmatprep.subr.bf16.mxu0 0
    %1091 = vmatpush1.bf16.msra.mxu0 0
    %1092 = vmatprep.subr.bf16.mxu0 0
    %1093 = vmatpush1.bf16.msra.mxu0 0
    %1094 = vmatprep.subr.bf16.mxu0 0
    %1095 = vmatpush1.bf16.msra.mxu0 0
    %1096 = vmatprep.subr.bf16.mxu0 0
    %1097 = vmatpush1.bf16.msra.mxu0 0
    %1098 = vmatprep.subr.bf16.mxu0 0
    %1099 = vmatpush1.bf16.msra.mxu0 0
    %1100 = vmatprep.subr.bf16.mxu0 0
    %1101 = vmatpush1.bf16.msra.mxu0 0
    %1102 = vmatprep.mubr.bf16.mxu0 0
    %1103 = vmatmul.mubr.bf16.gmra.mrb[0].mxu0 %v834
    %v1104 = vpop.f32.mrb[0].mxu0
    %v1105 = vadd.f32 0.0, %v1104
    %v1106 = vpop.f32.mrb[0].mxu0
    %v1107 = vadd.f32 0.0, %v1106
    %v1108 = vpop.f32.mrb[0].mxu0
    %v1109 = vadd.f32 0.0, %v1108
    %v1110 = vpop.f32.mrb[0].mxu0
    %v1111 = vadd.f32 0.0, %v1110
    %1112 = vdwg.mxu0
    %v1113 = vxor.u32 %v1062, 2147483648
    %v1114 = vxor.u32 %v1064, 2147483648
    %v1115 = vxor.u32 %v1066, 2147483648
    %v1116 = vxor.u32 %v1068, 2147483648
    %v1117 = vmul.f32 %v1113, 1.442695
    %v1118 = vpow.pop %v1117
    %v1119 = vmul.f32 %v1114, 1.442695
    %v1120 = vpow.pop %v1119
    %v1121 = vmul.f32 %v1115, 1.442695
    %v1122 = vpow.pop %v1121
    %v1123 = vmul.f32 %v1116, 1.442695
    %v1124 = vpow.pop %v1123
    %v1125 = vadd.f32 %v1118, 1.0
    %v1126 = vadd.f32 %v1120, 1.0
    %v1127 = vadd.f32 %v1122, 1.0
    %v1128 = vadd.f32 %v1124, 1.0
    %v1129 = vrcp.pop %v1125
    %v1130 = vmul.f32 1.0, %v1129
    %v1131 = vrcp.pop %v1126
    %v1132 = vmul.f32 1.0, %v1131
    %v1133 = vrcp.pop %v1127
    %v1134 = vmul.f32 1.0, %v1133
    %v1135 = vrcp.pop %v1128
    %v1136 = vmul.f32 1.0, %v1135
    %v1137 = vmul.f32 %v1062, %v1130
    %v1138 = vmul.f32 %v1064, %v1132
    %v1139 = vmul.f32 %v1066, %v1134
    %v1140 = vmul.f32 %v1068, %v1136
    %v1141 = vmul.f32 %v1137, %v1105
    %v1142 = vmul.f32 %v1138, %v1107
    %v1143 = vmul.f32 %v1139, %v1109
    %v1144 = vmul.f32 %v1140, %v1111
    %v1145 = vpack.c.bf16 %v1143, %v1141
    %v1146 = vpack.c.bf16 %v1144, %v1142
    %v1147 = vld [vmem:[#allocation10] sm:$0xf]
    %v1148 = vld [vmem:[#allocation10 + $0x4] sm:$0xf]
    %v1149 = vld [vmem:[#allocation10 + $0x8] sm:$0xf]
    %v1150 = vld [vmem:[#allocation10 + $0xc] sm:$0xf]
    %v1151 = vld [vmem:[#allocation10 + $0x10] sm:$0xf]
    %v1152 = vld [vmem:[#allocation10 + $0x14] sm:$0xf]
    %v1153 = vld [vmem:[#allocation10 + $0x18] sm:$0xf]
    %v1154 = vld [vmem:[#allocation10 + $0x1c] sm:$0xf]
    %v1155 = vld [vmem:[#allocation10 + $0x20] sm:$0xf]
    %v1156 = vld [vmem:[#allocation10 + $0x24] sm:$0xf]
    %v1157 = vld [vmem:[#allocation10 + $0x28] sm:$0xf]
    %v1158 = vld [vmem:[#allocation10 + $0x2c] sm:$0xf]
    %v1159 = vld [vmem:[#allocation10 + $0x30] sm:$0xf]
    %v1160 = vld [vmem:[#allocation10 + $0x34] sm:$0xf]
    %v1161 = vld [vmem:[#allocation10 + $0x38] sm:$0xf]
    %v1162 = vld [vmem:[#allocation10 + $0x3c] sm:$0xf]
    %v1163 = vld [vmem:[#allocation10 + $0x40] sm:$0xf]
    %v1164 = vld [vmem:[#allocation10 + $0x44] sm:$0xf]
    %v1165 = vld [vmem:[#allocation10 + $0x48] sm:$0xf]
    %v1166 = vld [vmem:[#allocation10 + $0x4c] sm:$0xf]
    %v1167 = vld [vmem:[#allocation10 + $0x50] sm:$0xf]
    %v1168 = vld [vmem:[#allocation10 + $0x54] sm:$0xf]
    %v1169 = vld [vmem:[#allocation10 + $0x58] sm:$0xf]
    %v1170 = vld [vmem:[#allocation10 + $0x5c] sm:$0xf]
    %v1171 = vld [vmem:[#allocation10 + $0x60] sm:$0xf]
    %v1172 = vld [vmem:[#allocation10 + $0x64] sm:$0xf]
    %v1173 = vld [vmem:[#allocation10 + $0x68] sm:$0xf]
    %v1174 = vld [vmem:[#allocation10 + $0x6c] sm:$0xf]
    %v1175 = vld [vmem:[#allocation10 + $0x70] sm:$0xf]
    %v1176 = vld [vmem:[#allocation10 + $0x74] sm:$0xf]
    %v1177 = vld [vmem:[#allocation10 + $0x78] sm:$0xf]
    %v1178 = vld [vmem:[#allocation10 + $0x7c] sm:$0xf]
    %v1211 = vunpack.c.l.b16 %v1147
    %v1212 = vunpack.c.l.b16 %v1148
    %v1213 = vunpack.c.l.b16 %v1149
    %v1214 = vunpack.c.l.b16 %v1150
    %v1215 = vunpack.c.l.b16 %v1151
    %v1216 = vunpack.c.l.b16 %v1152
    %v1217 = vunpack.c.l.b16 %v1153
    %v1218 = vunpack.c.l.b16 %v1154
    %v1219 = vunpack.c.l.b16 %v1155
    %v1220 = vunpack.c.l.b16 %v1156
    %v1221 = vunpack.c.l.b16 %v1157
    %v1222 = vunpack.c.l.b16 %v1158
    %v1223 = vunpack.c.l.b16 %v1159
    %v1224 = vunpack.c.l.b16 %v1160
    %v1225 = vunpack.c.l.b16 %v1161
    %v1226 = vunpack.c.l.b16 %v1162
    %v1227 = vunpack.c.l.b16 %v1163
    %v1228 = vunpack.c.l.b16 %v1164
    %v1229 = vunpack.c.l.b16 %v1165
    %v1230 = vunpack.c.l.b16 %v1166
    %v1231 = vunpack.c.l.b16 %v1167
    %v1232 = vunpack.c.l.b16 %v1168
    %v1233 = vunpack.c.l.b16 %v1169
    %v1234 = vunpack.c.l.b16 %v1170
    %v1235 = vunpack.c.l.b16 %v1171
    %v1236 = vunpack.c.l.b16 %v1172
    %v1237 = vunpack.c.l.b16 %v1173
    %v1238 = vunpack.c.l.b16 %v1174
    %v1239 = vunpack.c.l.b16 %v1175
    %v1240 = vunpack.c.l.b16 %v1176
    %v1241 = vunpack.c.l.b16 %v1177
    %v1242 = vunpack.c.l.b16 %v1178
    %v1243 = vpack.c.b16 %v1212, %v1211
    %v1244 = vpack.c.b16 %v1214, %v1213
    %v1245 = vpack.c.b16 %v1216, %v1215
    %v1246 = vpack.c.b16 %v1218, %v1217
    %v1247 = vpack.c.b16 %v1220, %v1219
    %v1248 = vpack.c.b16 %v1222, %v1221
    %v1249 = vpack.c.b16 %v1224, %v1223
    %v1250 = vpack.c.b16 %v1226, %v1225
    %v1251 = vpack.c.b16 %v1228, %v1227
    %v1252 = vpack.c.b16 %v1230, %v1229
    %v1253 = vpack.c.b16 %v1232, %v1231
    %v1254 = vpack.c.b16 %v1234, %v1233
    %v1255 = vpack.c.b16 %v1236, %v1235
    %v1256 = vpack.c.b16 %v1238, %v1237
    %v1257 = vpack.c.b16 %v1240, %v1239
    %v1258 = vpack.c.b16 %v1242, %v1241
    %1275 = vmatprep.subr.bf16.mxu0 0
    %1276 = vmatpush1.bf16.msra.mxu0 %v1243
    %1277 = vmatprep.subr.bf16.mxu0 0
    %1278 = vmatpush1.bf16.msra.mxu0 %v1244
    %1279 = vmatprep.subr.bf16.mxu0 0
    %1280 = vmatpush1.bf16.msra.mxu0 %v1245
    %1281 = vmatprep.subr.bf16.mxu0 0
    %1282 = vmatpush1.bf16.msra.mxu0 %v1246
    %1283 = vmatprep.subr.bf16.mxu0 0
    %1284 = vmatpush1.bf16.msra.mxu0 %v1247
    %1285 = vmatprep.subr.bf16.mxu0 0
    %1286 = vmatpush1.bf16.msra.mxu0 %v1248
    %1287 = vmatprep.subr.bf16.mxu0 0
    %1288 = vmatpush1.bf16.msra.mxu0 %v1249
    %1289 = vmatprep.subr.bf16.mxu0 0
    %1290 = vmatpush1.bf16.msra.mxu0 %v1250
    %1291 = vmatprep.subr.bf16.mxu0 0
    %1292 = vmatpush1.bf16.msra.mxu0 %v1251
    %1293 = vmatprep.subr.bf16.mxu0 0
    %1294 = vmatpush1.bf16.msra.mxu0 %v1252
    %1295 = vmatprep.subr.bf16.mxu0 0
    %1296 = vmatpush1.bf16.msra.mxu0 %v1253
    %1297 = vmatprep.subr.bf16.mxu0 0
    %1298 = vmatpush1.bf16.msra.mxu0 %v1254
    %1299 = vmatprep.subr.bf16.mxu0 0
    %1300 = vmatpush1.bf16.msra.mxu0 %v1255
    %1301 = vmatprep.subr.bf16.mxu0 0
    %1302 = vmatpush1.bf16.msra.mxu0 %v1256
    %1303 = vmatprep.subr.bf16.mxu0 0
    %1304 = vmatpush1.bf16.msra.mxu0 %v1257
    %1305 = vmatprep.subr.bf16.mxu0 0
    %1306 = vmatpush1.bf16.msra.mxu0 %v1258
    %1307 = vmatprep.mubr.bf16.mxu0 %v1146
    %1308 = vmatmul.mubr.bf16.gmra.mrb[0].mxu0 %v1145
    %v1309 = vpop.f32.mrb[0].mxu0
    %v1310 = vadd.f32 0.0, %v1309
    %v1311 = vpop.f32.mrb[0].mxu0
    %v1312 = vpop.f32.mrb[0].mxu0
    %v1313 = vadd.f32 0.0, %v1312
    %v1314 = vpop.f32.mrb[0].mxu0
    %1315 = vdwg.mxu0
    %v1316 = vadd.f32 %v812, %v1310
    %v1317 = vadd.f32 %v813, %v1313
    %1318 = vst [vmem:[#allocation11] sm:$0xff] %v1316
    %1319 = vst [vmem:[#allocation11 + $0x8] sm:$0xff] %v1317
    // Predicated region
    $region42: #{llama_layer_forward.1} parent=1 // pred_check
      _
    $region43: #{llama_layer_forward.1} parent=1 // pred_check_branch
      %1321 = sbr.rel (0) target = $region45
    $region44: #{llama_layer_forward.1} parent=1 // pred_region
      %s1323 = ssub.s32 256, 256
      %1324 = vsyncadd [#allocation4], %s1323
      %s1325 = sshll.u32 [#allocation11], 4
      %s1326 = int_to_ptr.vmem [resolvable:$true] %s1325
      %1331 = dma.vmem_to_hbm [thread:$0]  %s1326, 256, %s5, [#allocation4], 128, 128, 8
    $region45: #{llama_layer_forward.1} parent=1 // pred_fallthru
      _
    // Predicated region
    $region46: #{llama_layer_forward.1} parent=1 // pred_check
      _
    $region47: #{llama_layer_forward.1} parent=1 // pred_check_branch
      %1333 = sbr.rel (0) target = $region49
    $region48: #{llama_layer_forward.1} parent=1 // pred_region
      %1334 = dma.done [#allocation4], 256
    $region49: #{llama_layer_forward.1} parent=1 // pred_fallthru
      _
    %1335 = vsyncpa [#allocation3], 1
    %1336 = vsyncpa [#allocation6], 1
    %1337 = vsyncpa [#allocation9], 1
    %1338 = vsyncpa [#allocation4], 1

</llo_original>
